<compile_context>
chip_gen: v7x
topology: tpu7x:2x2x1
jax: 0.10.0
libtpu: 0.0.40
codegen_flags: <defaults>
</compile_context>

<pallas_src>
import functools

import jax
import jax.numpy as jnp
from jax import lax
from jax.experimental import pallas as pl
from jax.experimental.pallas import tpu as pltpu


def _round_up(x, m):
    return ((x + m - 1) // m) * m


def _homm_kernel(xs_ref, xt_ref, out_ref, cbuf_ref, *,
                 ns, nt, np_s, d_true, tile_d, tiles_per_split,
                 alpha_s, alpha_t):
    k = pl.program_id(1)                                  # D-tile index within split
    blk = pl.program_id(0) * tiles_per_split + k          # logical D-block index

    # Mask feature columns beyond the true D (tail tile of an un-padded D, or
    # a fully out-of-range duplicate block on the last split).  jnp.where (not
    # a multiply) so OOB garbage (possibly nan/inf) can never leak in.
    col = lax.broadcasted_iota(jnp.int32, (1, tile_d), 1)
    valid = (col + blk * tile_d) < d_true

    s = jnp.where(valid, xs_ref[...].astype(jnp.float32), 0.0)   # [ns, tile_d]
    t = jnp.where(valid, xt_ref[...].astype(jnp.float32), 0.0)   # [nt, tile_d]

    # Exact per-feature-column centering: only D is tiled, every tile holds
    # ALL rows; masked columns are identically zero and stay zero.
    s = s - jnp.mean(s, axis=0, keepdims=True)
    t = t - jnp.mean(t, axis=0, keepdims=True)

    @pl.when(k == 0)
    def _zero_staging():
        # Zero once per split so the sublane-padding gap rows contribute
        # nothing to the Gram.
        cbuf_ref[...] = jnp.zeros_like(cbuf_ref)

    # Fold normalisations into the operands and negate the target block:
    #   C = [alpha_s * xs_c ; -alpha_t * xt_c]  ->  loss = sum((C C^T)^3).
    cbuf_ref[0:ns, :] = (s * alpha_s).astype(cbuf_ref.dtype)
    cbuf_ref[np_s:np_s + nt, :] = (t * (-alpha_t)).astype(cbuf_ref.dtype)

    # One fused MXU matmul per tile (far better MXU fill than three tiny
    # Ns/Nt-sized matmuls).  ((1,),(1,)) contraction == A @ A.T, same form as
    # Q.K^T in the reference flash kernels -- no materialized transpose.
    cmat = cbuf_ref[...]
    contrib = lax.dot_general(cmat, cmat, (((1,), (1,)), ((), ())),
                              preferred_element_type=jnp.float32)

    # Direct store on the first tile of this split (no zero-init + RMW pass),
    # accumulate afterwards; the output block stays resident in VMEM across
    # the whole "arbitrary" D axis and is written back to HBM once per split.
    @pl.when(k == 0)
    def _first():
        out_ref[...] = contrib

    @pl.when(k > 0)
    def _accum():
        out_ref[...] += contrib


def _vmem_capacity_bytes():
    try:
        info = pltpu.get_tpu_info()
        cap = getattr(info, "vmem_capacity_bytes", None)
        if cap:
            return int(cap)
    except Exception:
        pass
    return 64 << 20          # v7x per-TensorCore physical VMEM: safe lower bound


def homm_loss(xs, xt, *, max_tile_d=2048, num_splits=1,
              use_bf16_matmul=False, vmem_budget_bytes=None):
    """Third-order HoMM loss.  xs: [Ns, D], xt: [Nt, D]  ->  scalar f32.

    num_splits:       set to 2 on v7x to spread the D reduction over both
                      TensorCores; 1 on v5e/v6e (single TC per chip).
    use_bf16_matmul:  opt-in bf16 Gram operands (f32 centering, f32 MXU
                      accumulation); ~4x MXU rate on v6e/v7x, ~3 fewer digits.
    """
    ns, d = xs.shape
    nt, d2 = xt.shape
    assert d == d2, "feature dims must match"

    np_s = _round_up(ns, 8)          # sublane-aligned slab offsets inside the
    np_t = _round_up(nt, 8)          # concatenated operand
    npad = np_s + np_t
    in_bytes = jnp.dtype(xs.dtype).itemsize
    cb_dtype = jnp.bfloat16 if use_bf16_matmul else jnp.float32
    cb_bytes = jnp.dtype(cb_dtype).itemsize

    cap = _vmem_capacity_bytes()
    budget = vmem_budget_bytes if vmem_budget_bytes is not None else cap // 2

    def vmem_needed(td, nbuf):
        td_l = _round_up(td, 128)
        out_b = 2 * npad * _round_up(npad, 128) * 4      # double-buffered output
        cbuf_b = npad * td_l * cb_bytes                  # staging operand
        in_b = nbuf * (np_s + np_t) * td_l * in_bytes    # pipelined input tiles
        return out_b + cbuf_b + in_b

    # Largest affordable lane-dense (128-multiple) feature tile; it need NOT
    # divide D -- the tail tile is masked in-kernel, so there is no wrapper
    # jnp.pad and no extra HBM round trip.
    max_td = max(128, (min(max_tile_d, _round_up(d, 128)) // 128) * 128)
    tile_d = 128
    for td in range(max_td, 0, -128):
        if vmem_needed(td, 2) <= budget:
            tile_d = td
            break
    if tile_d >= d:
        tile_d = d                     # single full-width tile (always legal)
    n_tiles = pl.cdiv(d, tile_d)

    num_splits = max(1, min(int(num_splits), n_tiles))
    tiles_per_split = pl.cdiv(n_tiles, num_splits)

    # Deeper input pipelining when it is free (hides HBM latency behind the
    # short per-tile compute for small Ns+Nt).
    n_buf = 3 if (tiles_per_split >= 3 and vmem_needed(tile_d, 3) <= budget) else 2
    in_kwargs = {"pipeline_mode": pl.Buffered(3)} if n_buf == 3 else {}

    # Raise the scoped VMEM limit so large double-buffered tiles are not
    # rejected by the per-generation default (16 MiB v5e / 32 MiB v6e, v7x).
    needed = vmem_needed(tile_d, n_buf)
    vmem_limit = int(min(cap - (4 << 20), max(needed + (8 << 20), 32 << 20)))

    # Normalisations folded into the operands:  alpha = N^(-1/3) * D^(-1/2).
    alpha_s = float(ns) ** (-1.0 / 3.0) * float(d) ** -0.5
    alpha_t = float(nt) ** (-1.0 / 3.0) * float(d) ** -0.5

    def d_block(c, k):
        # Clamp so a (fully masked) trailing duplicate block never indexes
        # past the last real block.
        return jnp.minimum(c * tiles_per_split + k, n_tiles - 1)

    kernel = functools.partial(
        _homm_kernel, ns=ns, nt=nt, np_s=np_s, d_true=d, tile_d=tile_d,
        tiles_per_split=tiles_per_split, alpha_s=alpha_s, alpha_t=alpha_t)

    parts = pl.pallas_call(
        kernel,
        out_shape=jax.ShapeDtypeStruct((num_splits, npad, npad), jnp.float32),
        grid_spec=pltpu.PrefetchScalarGridSpec(
            num_scalar_prefetch=0,
            grid=(num_splits, tiles_per_split),
            in_specs=[
                pl.BlockSpec((ns, tile_d), lambda c, k: (0, d_block(c, k)),
                             **in_kwargs),
                pl.BlockSpec((nt, tile_d), lambda c, k: (0, d_block(c, k)),
                             **in_kwargs),
            ],
            out_specs=pl.BlockSpec((None, npad, npad), lambda c, k: (c, 0, 0)),
            scratch_shapes=[pltpu.VMEM((npad, tile_d), cb_dtype)],
        ),
        compiler_params=pltpu.CompilerParams(
            dimension_semantics=("parallel", "arbitrary"),
            vmem_limit_bytes=vmem_limit,
        ),
        cost_estimate=pl.CostEstimate(
            flops=int(2 * npad * npad * d),
            transcendentals=0,
            bytes_accessed=int((ns + nt) * d * in_bytes
                               + num_splits * npad * npad * 4),
        ),
    )(xs, xt)

    # Tiny epilogue: combine per-split partial Grams, then cube and sum.  All
    # normalisation is already folded into the Gram, so this IS the loss
    # (padded rows/cols are zero and contribute nothing).
    # TODO(synk): for very large Ns+Nt (Gram bigger than ~VMEM/3, esp. v7x
    # 64 MiB) tile the Gram output over a 2-D grid instead of keeping one
    # resident (Ns+Nt)^2 block.
    g = jnp.sum(parts, axis=0)
    return jnp.sum(g * g * g)


def homm_loss_ref(xs, xt):
    """Pure-JAX reference mirroring the PyTorch HoMM_loss forward exactly."""
    xs = xs.astype(jnp.float32)
    xt = xt.astype(jnp.float32)
    xs_c = xs - jnp.mean(xs, axis=0)
    xt_c = xt - jnp.mean(xt, axis=0)
    hr_xs = jnp.einsum("ni,nj,nk->ijk", xs_c, xs_c, xs_c) / xs.shape[0]
    hr_xt = jnp.einsum("ni,nj,nk->ijk", xt_c, xt_c, xt_c) / xt.shape[0]
    return jnp.mean((hr_xs - hr_xt) ** 2)


if __name__ == "__main__":
    key = jax.random.PRNGKey(0)
    k1, k2, k3, k4 = jax.random.split(key, 4)

    # Case 1: default path.  D=192 is deliberately not a multiple of 128; the
    # whole feature dim fits one full-width tile (no padding, no masking).
    ns, nt, d = 16, 8, 192
    xs = jax.random.normal(k1, (ns, d), dtype=jnp.float32)
    xt = jax.random.normal(k2, (nt, d), dtype=jnp.float32)
    got = jax.block_until_ready(homm_loss(xs, xt))
    ref = homm_loss_ref(xs, xt)
    assert jnp.allclose(got, ref, rtol=1e-3, atol=1e-6), (got, ref)

    # Case 2: v7x-style dual-TensorCore split (parallel leading grid axis),
    # non-multiple-of-8 row counts (sublane gap padding), masked tail tile and
    # a fully out-of-range duplicate block on the second split.
    ns2, nt2, d2 = 20, 12, 288
    xs2 = jax.random.normal(k3, (ns2, d2), dtype=jnp.float32)
    xt2 = jax.random.normal(k4, (nt2, d2), dtype=jnp.float32)
    got2 = jax.block_until_ready(
        homm_loss(xs2, xt2, max_tile_d=128, num_splits=2))
    ref2 = homm_loss_ref(xs2, xt2)
    assert jnp.allclose(got2, ref2, rtol=1e-3, atol=1e-6), (got2, ref2)

    # Case 3: opt-in bf16 MXU path + 3-deep input pipelining (3 D tiles).
    got3 = jax.block_until_ready(
        homm_loss(xs2, xt2, max_tile_d=128, use_bf16_matmul=True))
    assert jnp.allclose(got3, ref2, rtol=1e-1, atol=1e-3), (got3, ref2)

    print("KERNEL_OK")
</pallas_src>

<mosaic_0001>
module attributes {stable_mosaic.version = 11 : i64} {
  func.func @_homm_kernel(%arg0: i32, %arg1: i32, %arg2: memref<16x192xf32, #tpu.memory_space<vmem>>, %arg3: memref<8x192xf32, #tpu.memory_space<vmem>>, %arg4: memref<1x24x24xf32, #tpu.memory_space<vmem>>, %arg5: memref<24x192xf32, #tpu.memory_space<vmem>>) attributes {dimension_semantics = [#tpu.dimension_semantics<parallel>, #tpu.dimension_semantics<arbitrary>], iteration_bounds = array<i64: 1, 1>, scalar_prefetch = 0 : i64, scratch_operands = 1 : i64, tpu.core_type = #tpu.core_type<tc>, window_params = [{transform_indices = @transform_0, window_bounds = array<i64: 16, 192>}, {transform_indices = @transform_1, window_bounds = array<i64: 8, 192>}, {transform_indices = @transform_2, window_bounds = array<i64: 1, 24, 24>}]} {
    %c1_i32 = arith.constant 1 : i32
    %0 = arith.muli %arg0, %c1_i32 : i32
    %1 = arith.addi %0, %arg1 : i32
    %2 = tpu.iota {dimensions = array<i32: 1>} : vector<1x192xi32>
    %c192_i32 = arith.constant 192 : i32
    %3 = arith.muli %1, %c192_i32 : i32
    %4 = vector.broadcast %3 : i32 to vector<1x192xi32>
    %5 = arith.addi %2, %4 : vector<1x192xi32>
    %c192_i32_0 = arith.constant 192 : i32
    %6 = vector.broadcast %c192_i32_0 : i32 to vector<1x192xi32>
    %7 = arith.cmpi slt, %5, %6 : vector<1x192xi32>
    %c0 = arith.constant 0 : index
    %c0_1 = arith.constant 0 : index
    %8 = vector.load %arg2[%c0, %c0_1] : memref<16x192xf32, #tpu.memory_space<vmem>>, vector<16x192xf32>
    %cst = arith.constant 0.000000e+00 : f32
    %9 = vector.shape_cast %7 : vector<1x192xi1> to vector<1x192xi1>
    %10 = vector.broadcast %9 : vector<1x192xi1> to vector<16x192xi1>
    %11 = vector.broadcast %cst : f32 to vector<16x192xf32>
    %12 = arith.select %10, %8, %11 : vector<16x192xi1>, vector<16x192xf32>
    %c0_2 = arith.constant 0 : index
    %c0_3 = arith.constant 0 : index
    %13 = vector.load %arg3[%c0_2, %c0_3] : memref<8x192xf32, #tpu.memory_space<vmem>>, vector<8x192xf32>
    %cst_4 = arith.constant 0.000000e+00 : f32
    %14 = vector.shape_cast %7 : vector<1x192xi1> to vector<1x192xi1>
    %15 = vector.broadcast %14 : vector<1x192xi1> to vector<8x192xi1>
    %16 = vector.broadcast %cst_4 : f32 to vector<8x192xf32>
    %17 = arith.select %15, %13, %16 : vector<8x192xi1>, vector<8x192xf32>
    %cst_5 = arith.constant dense<0.000000e+00> : vector<192xf32>
    %18 = vector.multi_reduction <add>, %12, %cst_5 [0] : vector<16x192xf32> to vector<192xf32>
    %19 = vector.shape_cast %18 : vector<192xf32> to vector<1x192xf32>
    %cst_6 = arith.constant 1.600000e+01 : f32
    %20 = vector.broadcast %cst_6 : f32 to vector<1x192xf32>
    %21 = arith.divf %19, %20 : vector<1x192xf32>
    %22 = vector.broadcast %21 : vector<1x192xf32> to vector<16x192xf32>
    %23 = arith.subf %12, %22 : vector<16x192xf32>
    %cst_7 = arith.constant dense<0.000000e+00> : vector<192xf32>
    %24 = vector.multi_reduction <add>, %17, %cst_7 [0] : vector<8x192xf32> to vector<192xf32>
    %25 = vector.shape_cast %24 : vector<192xf32> to vector<1x192xf32>
    %cst_8 = arith.constant 8.000000e+00 : f32
    %26 = vector.broadcast %cst_8 : f32 to vector<1x192xf32>
    %27 = arith.divf %25, %26 : vector<1x192xf32>
    %28 = vector.broadcast %27 : vector<1x192xf32> to vector<8x192xf32>
    %29 = arith.subf %17, %28 : vector<8x192xf32>
    %c0_i32 = arith.constant 0 : i32
    %30 = arith.cmpi eq, %arg1, %c0_i32 : i32
    %31 = arith.extui %30 : i1 to i32
    %c0_i32_9 = arith.constant 0 : i32
    %32 = arith.cmpi ne, %31, %c0_i32_9 : i32
    scf.if %32 {
      %cst_22 = arith.constant 0.000000e+00 : f32
      %47 = vector.broadcast %cst_22 : f32 to vector<24x192xf32>
      %c0_23 = arith.constant 0 : index
      %c0_24 = arith.constant 0 : index
      %48 = vector.load %arg5[%c0_23, %c0_24] : memref<24x192xf32, #tpu.memory_space<vmem>>, vector<24x192xf32>
      tpu.vector_store %arg5[%c0_23, %c0_24], %47 {strides = array<i32>} : memref<24x192xf32, #tpu.memory_space<vmem>>, vector<24x192xf32>,
    } else {
    }
    %cst_10 = arith.constant 0.0286402013 : f32
    %33 = vector.broadcast %cst_10 : f32 to vector<16x192xf32>
    %34 = arith.mulf %23, %33 : vector<16x192xf32>
    %c0_11 = arith.constant 0 : index
    %c0_12 = arith.constant 0 : index
    %35 = vector.load %arg5[%c0_11, %c0_12] : memref<24x192xf32, #tpu.memory_space<vmem>>, vector<16x192xf32>
    tpu.vector_store %arg5[%c0_11, %c0_12], %34 {strides = array<i32>} : memref<24x192xf32, #tpu.memory_space<vmem>>, vector<16x192xf32>,
    %cst_13 = arith.constant -0.0360843912 : f32
    %36 = vector.broadcast %cst_13 : f32 to vector<8x192xf32>
    %37 = arith.mulf %29, %36 : vector<8x192xf32>
    %c16 = arith.constant 16 : index
    %c0_14 = arith.constant 0 : index
    %38 = vector.load %arg5[%c16, %c0_14] : memref<24x192xf32, #tpu.memory_space<vmem>>, vector<8x192xf32>
    tpu.vector_store %arg5[%c16, %c0_14], %37 {strides = array<i32>} : memref<24x192xf32, #tpu.memory_space<vmem>>, vector<8x192xf32>,
    %c0_15 = arith.constant 0 : index
    %c0_16 = arith.constant 0 : index
    %39 = vector.load %arg5[%c0_15, %c0_16] : memref<24x192xf32, #tpu.memory_space<vmem>>, vector<24x192xf32>
    %cst_17 = arith.constant dense<0.000000e+00> : vector<24x24xf32>
    %40 = tpu.matmul %39, %39, %cst_17 {dimension_numbers = #tpu.dot_dimension_numbers<[1], [1], [0], [0], [0, 0, 1, 0], [], []>} : vector<24x192xf32>, vector<24x192xf32>, vector<24x24xf32> -> vector<24x24xf32>
    %c0_i32_18 = arith.constant 0 : i32
    %41 = arith.cmpi eq, %arg1, %c0_i32_18 : i32
    %42 = arith.extui %41 : i1 to i32
    %c0_i32_19 = arith.constant 0 : i32
    %43 = arith.cmpi ne, %42, %c0_i32_19 : i32
    scf.if %43 {
      %c0_22 = arith.constant 0 : index
      %c0_23 = arith.constant 0 : index
      %c0_24 = arith.constant 0 : index
      %47 = vector.load %arg4[%c0_22, %c0_23, %c0_24] : memref<1x24x24xf32, #tpu.memory_space<vmem>>, vector<1x24x24xf32>
      %48 = vector.shape_cast %47 : vector<1x24x24xf32> to vector<24x24xf32>
      %49 = vector.shape_cast %40 : vector<24x24xf32> to vector<1x24x24xf32>
      tpu.vector_store %arg4[%c0_22, %c0_23, %c0_24], %49 {strides = array<i32>} : memref<1x24x24xf32, #tpu.memory_space<vmem>>, vector<1x24x24xf32>,
    } else {
    }
    %c0_i32_20 = arith.constant 0 : i32
    %44 = arith.cmpi sgt, %arg1, %c0_i32_20 : i32
    %45 = arith.extui %44 : i1 to i32
    %c0_i32_21 = arith.constant 0 : i32
    %46 = arith.cmpi ne, %45, %c0_i32_21 : i32
    scf.if %46 {
      %c0_22 = arith.constant 0 : index
      %c0_23 = arith.constant 0 : index
      %c0_24 = arith.constant 0 : index
      %47 = vector.load %arg4[%c0_22, %c0_23, %c0_24] : memref<1x24x24xf32, #tpu.memory_space<vmem>>, vector<1x24x24xf32>
      %48 = vector.shape_cast %47 : vector<1x24x24xf32> to vector<24x24xf32>
      %49 = arith.addf %48, %40 : vector<24x24xf32>
      %c0_25 = arith.constant 0 : index
      %c0_26 = arith.constant 0 : index
      %c0_27 = arith.constant 0 : index
      %50 = vector.load %arg4[%c0_25, %c0_26, %c0_27] : memref<1x24x24xf32, #tpu.memory_space<vmem>>, vector<1x24x24xf32>
      %51 = vector.shape_cast %50 : vector<1x24x24xf32> to vector<24x24xf32>
      %52 = vector.shape_cast %49 : vector<24x24xf32> to vector<1x24x24xf32>
      tpu.vector_store %arg4[%c0_25, %c0_26, %c0_27], %52 {strides = array<i32>} : memref<1x24x24xf32, #tpu.memory_space<vmem>>, vector<1x24x24xf32>,
    } else {
    }
    return
  }
  func.func @transform_0(%arg0: i32, %arg1: i32) -> (i32, i32) {
    %c1_i32 = arith.constant 1 : i32
    %0 = arith.muli %arg0, %c1_i32 : i32
    %1 = arith.addi %0, %arg1 : i32
    %c0_i32 = arith.constant 0 : i32
    %2 = arith.minsi %1, %c0_i32 : i32
    %c0_i32_0 = arith.constant 0 : i32
    %c0_i32_1 = arith.constant 0 : i32
    return %c0_i32_0, %2 : i32, i32
  }
  func.func @transform_1(%arg0: i32, %arg1: i32) -> (i32, i32) {
    %c1_i32 = arith.constant 1 : i32
    %0 = arith.muli %arg0, %c1_i32 : i32
    %1 = arith.addi %0, %arg1 : i32
    %c0_i32 = arith.constant 0 : i32
    %2 = arith.minsi %1, %c0_i32 : i32
    %c0_i32_0 = arith.constant 0 : i32
    %c0_i32_1 = arith.constant 0 : i32
    return %c0_i32_0, %2 : i32, i32
  }
  func.func @transform_2(%arg0: i32, %arg1: i32) -> (i32, i32, i32) {
    %c0_i32 = arith.constant 0 : i32
    %c0_i32_0 = arith.constant 0 : i32
    %c0_i32_1 = arith.constant 0 : i32
    return %arg0, %c0_i32, %c0_i32_0 : i32, i32, i32
  }
}

</mosaic_0001>

<llo_original>
// kernel: tpu_custom_call.1
$region0: #{tpu_custom_call.1}
  #allocation0 [shape = 'u32[]', space=smem, size = 0x4, offset = 0x4, fixed_abs, tag = 'smem constant byte address 0x4 - core index']
  #allocation1 [shape = 'u32[144,128]{1,0:T(1,128)}', space=vmem, size = 0x12000, scoped, tag = 'internal scratch']
  #allocation2 [shape = 'f32[24,192]{1,0:T(8,128)}', space=vmem, size = 0x6000, scoped, tag = 'scratch operand']
  %s0 = inlined_call_operand.hbm [shape: f32[16,192], index: 0, kind: input, shape index: {}]
  %s1 = inlined_call_operand.hbm [shape: f32[8,192], index: 1, kind: input, shape index: {}]
  %s2 = inlined_call_operand.hbm [shape: f32[1,24,24], index: 2, kind: output, shape index: {}]
  %s3 = sld [smem:[#allocation0]]
  $region38: #{tpu_custom_call.1} parent=0
    _
  %s5 = ssub.s32 1, %s3
  %s6 = scalar_select 0, %s5, %s3
  $region1: #{tpu_custom_call.1} parent=0
    #allocation3 [shape = 'u8[16384]{0}', space=vmem, size = 0x4000, scoped, tag = 'input window, operand 0, single buffered']
    #allocation4 [shape = 's32[1]{0}', space=sflag, size = 0x4, scoped, tag = 'scoped memory for tpu_custom_call.1']
    #allocation5 [shape = 's32[1]{0}', space=sflag, size = 0x4, scoped, tag = 'scoped memory for tpu_custom_call.1']
    #allocation6 [shape = 'u8[8192]{0}', space=vmem, size = 0x2000, scoped, tag = 'input window, operand 1, single buffered']
    #allocation7 [shape = 's32[1]{0}', space=sflag, size = 0x4, scoped, tag = 'scoped memory for tpu_custom_call.1']
    #allocation8 [shape = 'u8[12288]{0}', space=vmem, size = 0x3000, scoped, tag = 'output window, operand 0, single buffered']
    %7 = vsyncpa [#allocation4], 0
    %8 = vsyncpa [#allocation7], 0
    %9 = vsyncpa [#allocation5], 0
    // Predicated region
    $region2: #{tpu_custom_call.1} parent=1 // pred_check
      _
    $region3: #{tpu_custom_call.1} parent=1 // pred_check_branch
      %11 = sbr.rel (0) target = $region5
    $region4: #{tpu_custom_call.1} parent=1 // pred_region
      %s12 = sadd.s32 0, 0
      %p13 = scmp.lt.s32.totalorder %s12, 0
      %s14 = scalar_select %p13, %s12, 0
      %s15 = smul.u32 2, %s14
      %s17 = ssub.s32 512, 512
      %18 = vsyncadd [#allocation4], %s17
      %s19 = smul.addr %s15, 128
      %s20 = scalar_lea.hbm %s0, %s19
      %s21 = sshll.u32 [#allocation3], 4
      %s22 = int_to_ptr.vmem [resolvable:$true] %s21
      %27 = dma.hbm_to_vmem [thread:$0]  %s20, 512, %s22, [#allocation4], 256, 256, 16
    $region5: #{tpu_custom_call.1} parent=1 // pred_fallthru
      _
    // Predicated region
    $region6: #{tpu_custom_call.1} parent=1 // pred_check
      _
    $region7: #{tpu_custom_call.1} parent=1 // pred_check_branch
      %29 = sbr.rel (0) target = $region9
    $region8: #{tpu_custom_call.1} parent=1 // pred_region
      %s30 = sadd.s32 0, 0
      %p31 = scmp.lt.s32.totalorder %s30, 0
      %s32 = scalar_select %p31, %s30, 0
      %s33 = smul.u32 2, %s32
      %s35 = ssub.s32 256, 256
      %36 = vsyncadd [#allocation7], %s35
      %s37 = smul.addr %s33, 128
      %s38 = scalar_lea.hbm %s1, %s37
      %s40 = sshll.u32 [#allocation6], 4
      %s41 = int_to_ptr.vmem [resolvable:$true] %s40
      %43 = dma.hbm_to_vmem [thread:$0]  %s38, 256, %s41, [#allocation7]
    $region9: #{tpu_custom_call.1} parent=1 // pred_fallthru
      _
    // Predicated region
    $region10: #{tpu_custom_call.1} parent=1 // pred_check
      _
    $region11: #{tpu_custom_call.1} parent=1 // pred_check_branch
      %45 = sbr.rel (0) target = $region13
    $region12: #{tpu_custom_call.1} parent=1 // pred_region
      %46 = dma.done [#allocation4], 512
    $region13: #{tpu_custom_call.1} parent=1 // pred_fallthru
      _
    // Predicated region
    $region14: #{tpu_custom_call.1} parent=1 // pred_check
      _
    $region15: #{tpu_custom_call.1} parent=1 // pred_check_branch
      %48 = sbr.rel (0) target = $region17
    $region16: #{tpu_custom_call.1} parent=1 // pred_region
      %49 = dma.done [#allocation7], 256
    $region17: #{tpu_custom_call.1} parent=1 // pred_fallthru
      _
    %s50 = sadd.s32 0, 0
    %p51 = scmp.lt.s32.totalorder %s50, 0
    %s52 = scalar_select %p51, %s50, 0
    %s53 = smul.u32 2, %s52
    %s54 = sadd.s32 0, 0
    %p55 = scmp.lt.s32.totalorder %s54, 0
    %s56 = scalar_select %p55, %s54, 0
    %s57 = smul.u32 2, %s56
    %s58 = sadd.s32 0, 0
    %v59 = vlaneseq
    %v60 = vand.u32 %v59, 127
    %v61 = vadd.s32 %v60, 128
    %s62 = smul.u32 %s58, 192
    %v63 = vstv %s62
    %v64 = vadd.s32 %v60, %v63
    %v65 = vadd.s32 %v61, %v63
    %vm66 = vcmp.lt.s32.totalorder %v64, 192
    %vm67 = vcmp.lt.s32.totalorder %v65, 192
    %v68 = vld [vmem:[#allocation3] sm:$0xff]
    %v69 = vld [vmem:[#allocation3 + $0x8] sm:$0xff]
    %v70 = vld [vmem:[#allocation3 + $0x10] sm:$0xff]
    %v71 = vld [vmem:[#allocation3 + $0x18] sm:$0xff]
    %v72 = vsel %vm66, 1, 0
    %v73 = vsel %vm67, 1, 0
    %vm74 = vcmp.eq.s32.totalorder %v72, 1
    %vm75 = vcmp.eq.s32.totalorder %v73, 1
    %v76 = vsel %vm74, %v68, 0.0
    %v77 = vsel %vm75, %v69, 0.0
    %v78 = vsel %vm74, %v70, 0.0
    %v79 = vsel %vm75, %v71, 0.0
    %v80 = vld [vmem:[#allocation6] sm:$0xff]
    %v81 = vld [vmem:[#allocation6 + $0x8] sm:$0xff]
    %v82 = vsel %vm74, %v80, 0.0
    %v83 = vsel %vm75, %v81, 0.0
    %v84 = vadd.f32 %v76, %v78
    %v85 = vrot.slane %v84, 4
    %v86 = vadd.f32 %v84, %v85
    %v87 = vrot.slane %v86, 2
    %v88 = vadd.f32 %v86, %v87
    %v89 = vrot.slane %v88, 1
    %v90 = vadd.f32 %v88, %v89
    %vm91 = vcmask 523264
    %v92 = vsel %vm91, %v77, 0.0
    %v93 = vsel %vm91, %v79, 0.0
    %v94 = vadd.f32 %v92, %v93
    %v95 = vrot.slane %v94, 4
    %v96 = vadd.f32 %v94, %v95
    %v97 = vrot.slane %v96, 2
    %v98 = vadd.f32 %v96, %v97
    %v99 = vrot.slane %v98, 1
    %v100 = vadd.f32 %v98, %v99
    %v101 = vrcp.pop 16.0
    %v102 = vmul.f32 %v90, %v101
    %v103 = vmul.f32 %v100, %v101
    %v104 = vsub.f32 %v76, %v102
    %v105 = vsub.f32 %v77, %v103
    %v106 = vsub.f32 %v78, %v102
    %v107 = vsub.f32 %v79, %v103
    %v108 = vrot.slane %v82, 4
    %v109 = vadd.f32 %v82, %v108
    %v110 = vrot.slane %v109, 2
    %v111 = vadd.f32 %v109, %v110
    %v112 = vrot.slane %v111, 1
    %v113 = vadd.f32 %v111, %v112
    %v114 = vsel %vm91, %v83, 0.0
    %v115 = vrot.slane %v114, 4
    %v116 = vadd.f32 %v114, %v115
    %v117 = vrot.slane %v116, 2
    %v118 = vadd.f32 %v116, %v117
    %v119 = vrot.slane %v118, 1
    %v120 = vadd.f32 %v118, %v119
    %v121 = vrcp.pop 8.0
    %v122 = vmul.f32 %v113, %v121
    %v123 = vmul.f32 %v120, %v121
    %v124 = vsub.f32 %v82, %v122
    %v125 = vsub.f32 %v83, %v123
    %p126 = scmp.eq.s32.totalorder 0, 0
    // Predicated region
    $region18: #{tpu_custom_call.1} parent=1 // pred_check
      %p127 = pneg %p126
    $region19: #{tpu_custom_call.1} parent=1 // pred_check_branch
      %129 = sbr.rel (%p127) target = $region21
    $region20: #{tpu_custom_call.1} parent=1 // pred_region
      %130 = vst [vmem:[#allocation2] sm:$0xff] 0.0
      %131 = vst.msk [vmem:[#allocation2 + $0x8] sm:$0xff] %vm91, 0.0
      %132 = vst [vmem:[#allocation2 + $0x10] sm:$0xff] 0.0
      %133 = vst.msk [vmem:[#allocation2 + $0x18] sm:$0xff] %vm91, 0.0
      %134 = vst [vmem:[#allocation2 + $0x20] sm:$0xff] 0.0
      %135 = vst.msk [vmem:[#allocation2 + $0x28] sm:$0xff] %vm91, 0.0
    $region21: #{tpu_custom_call.1} parent=1 // pred_fallthru
      _
    %v136 = vmul.f32 %v104, 0.028640201
    %v137 = vmul.f32 %v105, 0.028640201
    %v138 = vmul.f32 %v106, 0.028640201
    %v139 = vmul.f32 %v107, 0.028640201
    %140 = vst [vmem:[#allocation2] sm:$0xff] %v136
    %141 = vst.msk [vmem:[#allocation2 + $0x8] sm:$0xff] %vm91, %v137
    %142 = vst [vmem:[#allocation2 + $0x10] sm:$0xff] %v138
    %143 = vst.msk [vmem:[#allocation2 + $0x18] sm:$0xff] %vm91, %v139
    %v144 = vmul.f32 %v124, -0.03608439
    %v145 = vmul.f32 %v125, -0.03608439
    %146 = vst [vmem:[#allocation2 + $0x20] sm:$0xff] %v144
    %147 = vst.msk [vmem:[#allocation2 + $0x28] sm:$0xff] %vm91, %v145
    %v148 = vld [vmem:[#allocation2] sm:$0xff]
    %v149 = vld [vmem:[#allocation2 + $0x8] sm:$0xff]
    %v150 = vld [vmem:[#allocation2 + $0x10] sm:$0xff]
    %v151 = vld [vmem:[#allocation2 + $0x18] sm:$0xff]
    %v152 = vld [vmem:[#allocation2 + $0x20] sm:$0xff]
    %v153 = vld [vmem:[#allocation2 + $0x28] sm:$0xff]
    %v155 = vsel %vm91, %v149, 0
    %v158 = vsel %vm91, %v151, 0
    %v161 = vsel %vm91, %v153, 0
    %163 = vmatprep.subr.mxu0 %v155
    %164 = vmatpush1.xpose.msra.mxu0 %v148
    %165 = vmatprep.subr.mxu0 %v158
    %166 = vmatpush1.xpose.msra.mxu0 %v150
    %167 = vmatprep.subr.mxu0 %v161
    %168 = vmatpush1.xpose.msra.mxu0 %v152
    %169 = vmatprep.subr.mxu0 0.0
    %170 = vmatpush1.xpose.msra.mxu0 0.0
    %171 = vmatprep.subr.mxu0 0.0
    %172 = vmatpush1.xpose.msra.mxu0 0.0
    %173 = vmatprep.subr.mxu0 0.0
    %174 = vmatpush1.xpose.msra.mxu0 0.0
    %175 = vmatprep.subr.mxu0 0.0
    %176 = vmatpush1.xpose.msra.mxu0 0.0
    %177 = vmatprep.subr.mxu0 0.0
    %178 = vmatpush1.xpose.msra.mxu0 0.0
    %179 = vmatprep.subr.mxu0 0.0
    %180 = vmatpush1.xpose.msra.mxu0 0.0
    %181 = vmatprep.subr.mxu0 0.0
    %182 = vmatpush1.xpose.msra.mxu0 0.0
    %183 = vmatprep.subr.mxu0 0.0
    %184 = vmatpush1.xpose.msra.mxu0 0.0
    %185 = vmatprep.subr.mxu0 0.0
    %186 = vmatpush1.xpose.msra.mxu0 0.0
    %187 = vmatprep.subr.mxu0 0.0
    %188 = vmatpush1.xpose.msra.mxu0 0.0
    %189 = vmatprep.subr.mxu0 0.0
    %190 = vmatpush1.xpose.msra.mxu0 0.0
    %191 = vmatprep.subr.mxu0 0.0
    %192 = vmatpush1.xpose.msra.mxu0 0.0
    %193 = vmatprep.subr.mxu0 0.0
    %194 = vmatpush1.xpose.msra.mxu0 0.0
    %195 = vmatprep.subr.mxu0 0.0
    %196 = vmatpush1.xpose.msra.mxu0 0.0
    %197 = vmatprep.subr.mxu0 0.0
    %198 = vmatpush1.xpose.msra.mxu0 0.0
    %199 = vmatprep.subr.mxu0 0.0
    %200 = vmatpush1.xpose.msra.mxu0 0.0
    %201 = vmatprep.subr.mxu0 0.0
    %202 = vmatpush1.xpose.msra.mxu0 0.0
    %203 = vmatprep.subr.mxu0 0.0
    %204 = vmatpush1.xpose.msra.mxu0 0.0
    %205 = vmatprep.subr.mxu0 0.0
    %206 = vmatpush1.xpose.msra.mxu0 0.0
    %207 = vmatprep.subr.mxu0 0.0
    %208 = vmatpush1.xpose.msra.mxu0 0.0
    %209 = vmatprep.subr.mxu0 0.0
    %210 = vmatpush1.xpose.msra.mxu0 0.0
    %211 = vmatprep.subr.mxu0 0.0
    %212 = vmatpush1.xpose.msra.mxu0 0.0
    %213 = vmatprep.subr.mxu0 0.0
    %214 = vmatpush1.xpose.msra.mxu0 0.0
    %215 = vmatprep.subr.mxu0 0.0
    %216 = vmatpush1.xpose.msra.mxu0 0.0
    %217 = vmatprep.subr.mxu0 0.0
    %218 = vmatpush1.xpose.msra.mxu0 0.0
    %219 = vmatprep.subr.mxu0 0.0
    %220 = vmatpush1.xpose.msra.mxu0 0.0
    %221 = vmatprep.subr.mxu0 0.0
    %222 = vmatpush1.xpose.msra.mxu0 0.0
    %223 = vmatprep.subr.mxu0 0.0
    %224 = vmatpush1.xpose.msra.mxu0 0.0
    %225 = vmatprep.subr.mxu0 0.0
    %226 = vmatpush1.xpose.msra.mxu0 0.0
    %227 = vmatprep.mubr.f32.mxu0 %v155
    %228 = vmatmul.mubr.f32.gmra.mrb[0].mxu0 %v148
    %v229 = vpop.f32.mrb[0].mxu0
    %v230 = vadd.f32 0.0, %v229
    %v231 = vpop.f32.mrb[0].mxu0
    %232 = vmatprep.mubr.f32.mxu0 %v158
    %233 = vmatmul.mubr.f32.gmra.mrb[0].mxu0 %v150
    %v234 = vpop.f32.mrb[0].mxu0
    %v235 = vadd.f32 0.0, %v234
    %v236 = vpop.f32.mrb[0].mxu0
    %237 = vmatprep.mubr.f32.mxu0 %v161
    %238 = vmatmul.mubr.f32.gmra.mrb[0].mxu0 %v152
    %v239 = vpop.f32.mrb[0].mxu0
    %v240 = vadd.f32 0.0, %v239
    %v241 = vpop.f32.mrb[0].mxu0
    %242 = vdwg.mxu0
    // Predicated region
    $region22: #{tpu_custom_call.1} parent=1 // pred_check
      %p243 = pneg %p126
    $region23: #{tpu_custom_call.1} parent=1 // pred_check_branch
      %245 = sbr.rel (%p243) target = $region25
    $region24: #{tpu_custom_call.1} parent=1 // pred_region
      %vm246 = vcmask 195584
      %247 = vst.msk [vmem:[#allocation8] sm:$0xff] %vm246, %v230
      %248 = vst.msk [vmem:[#allocation8 + $0x8] sm:$0xff] %vm246, %v235
      %249 = vst.msk [vmem:[#allocation8 + $0x10] sm:$0xff] %vm246, %v240
    $region25: #{tpu_custom_call.1} parent=1 // pred_fallthru
      _
    %p250 = scmp.gt.s32.totalorder 0, 0
    // Predicated region
    $region26: #{tpu_custom_call.1} parent=1 // pred_check
      %p251 = pneg %p250
    $region27: #{tpu_custom_call.1} parent=1 // pred_check_branch
      %253 = sbr.rel (%p251) target = $region29
    $region28: #{tpu_custom_call.1} parent=1 // pred_region
      %v254 = vld [vmem:[#allocation8] sm:$0xff]
      %v255 = vld [vmem:[#allocation8 + $0x8] sm:$0xff]
      %v256 = vld [vmem:[#allocation8 + $0x10] sm:$0xff]
      %v257 = vadd.f32 %v254, %v230
      %v258 = vadd.f32 %v255, %v235
      %v259 = vadd.f32 %v256, %v240
      %vm260 = vcmask 195584
      %261 = vst.msk [vmem:[#allocation8] sm:$0xff] %vm260, %v257
      %262 = vst.msk [vmem:[#allocation8 + $0x8] sm:$0xff] %vm260, %v258
      %263 = vst.msk [vmem:[#allocation8 + $0x10] sm:$0xff] %vm260, %v259
    $region29: #{tpu_custom_call.1} parent=1 // pred_fallthru
      _
    // Predicated region
    $region30: #{tpu_custom_call.1} parent=1 // pred_check
      _
    $region31: #{tpu_custom_call.1} parent=1 // pred_check_branch
      %265 = sbr.rel (0) target = $region33
    $region32: #{tpu_custom_call.1} parent=1 // pred_region
      %s267 = ssub.s32 384, 384
      %268 = vsyncadd [#allocation5], %s267
      %s269 = sshll.u32 [#allocation8], 4
      %s270 = int_to_ptr.vmem [resolvable:$true] %s269
      %275 = dma.vmem_to_hbm [thread:$0]  %s270, 384, %s2, [#allocation5], 128, 128, 8
    $region33: #{tpu_custom_call.1} parent=1 // pred_fallthru
      _
    // Predicated region
    $region34: #{tpu_custom_call.1} parent=1 // pred_check
      _
    $region35: #{tpu_custom_call.1} parent=1 // pred_check_branch
      %277 = sbr.rel (0) target = $region37
    $region36: #{tpu_custom_call.1} parent=1 // pred_region
      %278 = dma.done [#allocation5], 384
    $region37: #{tpu_custom_call.1} parent=1 // pred_fallthru
      _
    %279 = vsyncpa [#allocation4], 1
    %280 = vsyncpa [#allocation7], 1
    %281 = vsyncpa [#allocation5], 1

</llo_original>
